<compile_context>
chip_gen: v5e
topology: v5e:2x2
jax: 0.10.0
libtpu: 0.0.40
codegen_flags: <defaults>
</compile_context>

<pallas_src>
import jax
import jax.numpy as jnp
from jax.experimental import pallas as pl
from jax.experimental.pallas import tpu as pltpu


def _round_up(x, m):
    return ((x + m - 1) // m) * m


def _ffn_kernel(x_ref, w1_ref, b1_ref, w2_ref, b2_ref, o_ref):
    x = x_ref[...].astype(jnp.float32)                                  # (TM, Hp), residual in f32
    xc = x.astype(w1_ref.dtype)                                         # cast for the MXU (bf16 default)
    h = jnp.dot(xc, w1_ref[...], preferred_element_type=jnp.float32)    # (TM, Hp)
    h = jnp.maximum(h + b1_ref[...], 0.0)                               # bias + ReLU in f32 (VPU)
    y = jnp.dot(h.astype(w2_ref.dtype), w2_ref[...],
                preferred_element_type=jnp.float32)                     # (TM, Hp)
    o_ref[...] = (y + b2_ref[...] + x).astype(o_ref.dtype)              # bias + residual


def prepare_params(w1, b1, w2, b2, *, compute_dtype=jnp.bfloat16):
    """One-time parameter prep (do NOT call per forward): transpose Conv1d weights (out, in)
    to (H_in, H_out), zero-pad hidden to a multiple of 128 (lane-dense), cast weights to the
    matmul dtype, keep biases in f32."""
    H = w1.shape[0]
    Hp = _round_up(H, 128)

    def pad_w(w):
        wt = w.T                                     # (in, out)
        return jnp.pad(wt, ((0, Hp - H), (0, Hp - H))).astype(compute_dtype)

    def pad_b(b):
        return jnp.pad(b, (0, Hp - H)).reshape(1, Hp).astype(jnp.float32)

    return pad_w(w1), pad_b(b1), pad_w(w2), pad_b(b2)


def pointwise_feedforward(inputs, w1_t, b1_r, w2_t, b2_r, *, tm=1024,
                          vmem_budget_bytes=48 * 1024 * 1024):
    """inputs: (B, S, H).  w1_t/w2_t: (Hp, Hp) pre-transposed/pre-cast weights from
    prepare_params().  b1_r/b2_r: (1, Hp) f32 biases."""
    B, S, H = inputs.shape
    Hp = w1_t.shape[0]
    M = B * S

    wbytes = jnp.dtype(w1_t.dtype).itemsize
    xbytes = jnp.dtype(inputs.dtype).itemsize

    # Working set: two resident weights (counted conservatively as double-buffered) + biases
    # + double-buffered x and out tiles.
    def working_set(t):
        weights = 2 * 2 * Hp * Hp * wbytes
        biases = 2 * 2 * Hp * 4
        io = 4 * t * Hp * xbytes          # x + out, 2 buffers each
        return weights + biases + io

    # Row tile: as large as possible, multiple of 8, within the VMEM budget.
    tm_eff = min(tm, _round_up(M, 8))
    while tm_eff > 64 and working_set(tm_eff) > vmem_budget_bytes:
        tm_eff = max(64, tm_eff // 2)

    Mp = _round_up(M, tm_eff)

    x2d = inputs.reshape(M, H)
    if Mp != M or Hp != H:
        x2d = jnp.pad(x2d, ((0, Mp - M), (0, Hp - H)))

    vmem_limit = int(min(max(working_set(tm_eff) + 8 * 1024 * 1024,
                             32 * 1024 * 1024),
                         128 * 1024 * 1024))

    out2d = pl.pallas_call(
        _ffn_kernel,
        out_shape=jax.ShapeDtypeStruct((Mp, Hp), inputs.dtype),
        grid_spec=pltpu.PrefetchScalarGridSpec(
            num_scalar_prefetch=0,
            grid=(Mp // tm_eff,),
            in_specs=[
                pl.BlockSpec((tm_eff, Hp), lambda i: (i, 0)),   # x tile (pipelined)
                pl.BlockSpec((Hp, Hp), lambda i: (0, 0)),       # W1^T (resident, constant index)
                pl.BlockSpec((1, Hp), lambda i: (0, 0)),        # b1
                pl.BlockSpec((Hp, Hp), lambda i: (0, 0)),       # W2^T (resident, constant index)
                pl.BlockSpec((1, Hp), lambda i: (0, 0)),        # b2
            ],
            out_specs=pl.BlockSpec((tm_eff, Hp), lambda i: (i, 0)),
        ),
        # Each x block is fully consumed before its output block is written -> safe to alias.
        input_output_aliases={0: 0},
        compiler_params=pltpu.CompilerParams(
            dimension_semantics=("parallel",),   # lets v7x shard the row grid across both TCs
            vmem_limit_bytes=vmem_limit,
        ),
    )(x2d, w1_t, b1_r, w2_t, b2_r)

    if Mp != M or Hp != H:
        out2d = out2d[:M, :H]
    return out2d.reshape(B, S, H)


def _reference(inputs, w1, b1, w2, b2):
    h = jnp.maximum(jnp.einsum("bsh,oh->bso", inputs, w1) + b1, 0.0)
    y = jnp.einsum("bsh,oh->bso", h, w2) + b2
    return y + inputs


if __name__ == "__main__":
    batch, seq, hidden = 2, 8, 32   # inputs (B, S, H); conv channels = hidden

    key = jax.random.PRNGKey(0)
    kx, k1, k2, k3, k4 = jax.random.split(key, 5)

    x = jax.random.normal(kx, (batch, seq, hidden), dtype=jnp.float32)
    # Deterministic param init (Conv1d weight is (H, H, 1); trailing kernel dim squeezed out).
    bound = 1.0 / (hidden ** 0.5)
    w1 = jax.random.uniform(k1, (hidden, hidden), jnp.float32, -bound, bound)
    b1 = jax.random.uniform(k2, (hidden,), jnp.float32, -bound, bound)
    w2 = jax.random.uniform(k3, (hidden, hidden), jnp.float32, -bound, bound)
    b2 = jax.random.uniform(k4, (hidden,), jnp.float32, -bound, bound)

    ref = _reference(x, w1, b1, w2, b2)
    ffn = jax.jit(pointwise_feedforward)

    # f32 matmul path: tight check against the XLA reference.
    params_f32 = prepare_params(w1, b1, w2, b2, compute_dtype=jnp.float32)
    out_f32 = jax.block_until_ready(ffn(x, *params_f32))
    assert out_f32.shape == x.shape
    assert jnp.allclose(out_f32, ref, atol=1e-5, rtol=1e-5)

    # bf16 matmul path (default / fast): f32 accumulation, bf16-level tolerance.
    params_bf16 = prepare_params(w1, b1, w2, b2, compute_dtype=jnp.bfloat16)
    out_bf16 = jax.block_until_ready(ffn(x, *params_bf16))
    assert out_bf16.shape == x.shape
    assert jnp.allclose(out_bf16, ref, atol=1e-2, rtol=1e-2)

    print("KERNEL_OK")
</pallas_src>

<mosaic_0001>
module attributes {stable_mosaic.version = 11 : i64} {
  func.func @_ffn_kernel(%arg0: i32, %arg1: memref<16x128xf32, #tpu.memory_space<vmem>>, %arg2: memref<128x128xf32, #tpu.memory_space<vmem>>, %arg3: memref<1x128xf32, #tpu.memory_space<vmem>>, %arg4: memref<128x128xf32, #tpu.memory_space<vmem>>, %arg5: memref<1x128xf32, #tpu.memory_space<vmem>>, %arg6: memref<16x128xf32, #tpu.memory_space<vmem>>) attributes {dimension_semantics = [#tpu.dimension_semantics<parallel>], iteration_bounds = array<i64: 1>, scalar_prefetch = 0 : i64, scratch_operands = 0 : i64, tpu.core_type = #tpu.core_type<tc>, window_params = [{transform_indices = @transform_0, window_bounds = array<i64: 16, 128>}, {pipeline_mode = #tpu.pipeline_mode<synchronous>, transform_indices = @transform_1, window_bounds = array<i64: 128, 128>}, {pipeline_mode = #tpu.pipeline_mode<synchronous>, transform_indices = @transform_2, window_bounds = array<i64: 1, 128>}, {pipeline_mode = #tpu.pipeline_mode<synchronous>, transform_indices = @transform_3, window_bounds = array<i64: 128, 128>}, {pipeline_mode = #tpu.pipeline_mode<synchronous>, transform_indices = @transform_4, window_bounds = array<i64: 1, 128>}, {transform_indices = @transform_5, window_bounds = array<i64: 16, 128>}]} {
    %c0 = arith.constant 0 : index
    %c0_0 = arith.constant 0 : index
    %0 = vector.load %arg1[%c0, %c0_0] : memref<16x128xf32, #tpu.memory_space<vmem>>, vector<16x128xf32>
    %c0_1 = arith.constant 0 : index
    %c0_2 = arith.constant 0 : index
    %1 = vector.load %arg2[%c0_1, %c0_2] : memref<128x128xf32, #tpu.memory_space<vmem>>, vector<128x128xf32>
    %cst = arith.constant dense<0.000000e+00> : vector<16x128xf32>
    %2 = tpu.matmul %0, %1, %cst {dimension_numbers = #tpu.dot_dimension_numbers<[1], [0], [0], [1], [0, 0, 1, 1], [], []>} : vector<16x128xf32>, vector<128x128xf32>, vector<16x128xf32> -> vector<16x128xf32>
    %c0_3 = arith.constant 0 : index
    %c0_4 = arith.constant 0 : index
    %3 = vector.load %arg3[%c0_3, %c0_4] : memref<1x128xf32, #tpu.memory_space<vmem>>, vector<1x128xf32>
    %4 = vector.broadcast %3 : vector<1x128xf32> to vector<16x128xf32>
    %5 = arith.addf %2, %4 : vector<16x128xf32>
    %cst_5 = arith.constant 0.000000e+00 : f32
    %6 = vector.broadcast %cst_5 : f32 to vector<16x128xf32>
    %7 = arith.maximumf %5, %6 : vector<16x128xf32>
    %c0_6 = arith.constant 0 : index
    %c0_7 = arith.constant 0 : index
    %8 = vector.load %arg4[%c0_6, %c0_7] : memref<128x128xf32, #tpu.memory_space<vmem>>, vector<128x128xf32>
    %cst_8 = arith.constant dense<0.000000e+00> : vector<16x128xf32>
    %9 = tpu.matmul %7, %8, %cst_8 {dimension_numbers = #tpu.dot_dimension_numbers<[1], [0], [0], [1], [0, 0, 1, 1], [], []>} : vector<16x128xf32>, vector<128x128xf32>, vector<16x128xf32> -> vector<16x128xf32>
    %c0_9 = arith.constant 0 : index
    %c0_10 = arith.constant 0 : index
    %10 = vector.load %arg5[%c0_9, %c0_10] : memref<1x128xf32, #tpu.memory_space<vmem>>, vector<1x128xf32>
    %11 = vector.broadcast %10 : vector<1x128xf32> to vector<16x128xf32>
    %12 = arith.addf %9, %11 : vector<16x128xf32>
    %13 = arith.addf %12, %0 : vector<16x128xf32>
    %c0_11 = arith.constant 0 : index
    %c0_12 = arith.constant 0 : index
    %14 = vector.load %arg6[%c0_11, %c0_12] : memref<16x128xf32, #tpu.memory_space<vmem>>, vector<16x128xf32>
    tpu.vector_store %arg6[%c0_11, %c0_12], %13 {strides = array<i32>} : memref<16x128xf32, #tpu.memory_space<vmem>>, vector<16x128xf32>,
    return
  }
  func.func @transform_0(%arg0: i32) -> (i32, i32) {
    %c0_i32 = arith.constant 0 : i32
    %c0_i32_0 = arith.constant 0 : i32
    return %arg0, %c0_i32 : i32, i32
  }
  func.func @transform_1(%arg0: i32) -> (i32, i32) {
    %c0_i32 = arith.constant 0 : i32
    %c0_i32_0 = arith.constant 0 : i32
    %c0_i32_1 = arith.constant 0 : i32
    return %c0_i32, %c0_i32_0 : i32, i32
  }
  func.func @transform_2(%arg0: i32) -> (i32, i32) {
    %c0_i32 = arith.constant 0 : i32
    %c0_i32_0 = arith.constant 0 : i32
    %c0_i32_1 = arith.constant 0 : i32
    return %c0_i32, %c0_i32_0 : i32, i32
  }
  func.func @transform_3(%arg0: i32) -> (i32, i32) {
    %c0_i32 = arith.constant 0 : i32
    %c0_i32_0 = arith.constant 0 : i32
    %c0_i32_1 = arith.constant 0 : i32
    return %c0_i32, %c0_i32_0 : i32, i32
  }
  func.func @transform_4(%arg0: i32) -> (i32, i32) {
    %c0_i32 = arith.constant 0 : i32
    %c0_i32_0 = arith.constant 0 : i32
    %c0_i32_1 = arith.constant 0 : i32
    return %c0_i32, %c0_i32_0 : i32, i32
  }
  func.func @transform_5(%arg0: i32) -> (i32, i32) {
    %c0_i32 = arith.constant 0 : i32
    %c0_i32_0 = arith.constant 0 : i32
    return %arg0, %c0_i32 : i32, i32
  }
}

</mosaic_0001>

<llo_original>
// kernel: pointwise_feedforward.1
$region0: #{pointwise_feedforward.1}
  #allocation0 [shape = 'u32[]', space=smem, size = 0x4, offset = 0x4, fixed_abs, tag = 'smem constant byte address 0x4 - core index']
  #allocation1 [shape = 'u32[72,128]{1,0:T(1,128)}', space=vmem, size = 0x9000, scoped, tag = 'internal scratch']
  %s0 = inlined_call_operand.vmem [shape: f32[16,128], index: 0, kind: input, shape index: {}, may-alias: {0,5}]
  %s1 = inlined_call_operand.hbm [shape: f32[128,128], index: 1, kind: input, shape index: {}]
  %s2 = inlined_call_operand.vmem [shape: f32[1,128], index: 2, kind: input, shape index: {}]
  %s3 = inlined_call_operand.hbm [shape: f32[128,128], index: 3, kind: input, shape index: {}]
  %s4 = inlined_call_operand.vmem [shape: f32[1,128], index: 4, kind: input, shape index: {}]
  %s5 = inlined_call_operand.vmem [shape: f32[16,128], index: 5, kind: output, shape index: {}, may-alias: {0,5}]
  %s6 = sld [smem:[#allocation0]]
  $region38: #{pointwise_feedforward.1} parent=0
    _
  %s8 = ssub.s32 1, %s6
  %s9 = scalar_select 0, %s8, %s6
  $region1: #{pointwise_feedforward.1} parent=0
    #allocation2 [shape = 'u8[65536]{0}', space=vmem, size = 0x10000, scoped, tag = 'input window, operand 1, single buffered']
    #allocation3 [shape = 's32[1]{0}', space=sflag, size = 0x4, scoped, tag = 'scoped memory for pointwise_feedforward.1']
    #allocation4 [shape = 'u8[65536]{0}', space=vmem, size = 0x10000, scoped, tag = 'input window, operand 3, single buffered']
    #allocation5 [shape = 's32[1]{0}', space=sflag, size = 0x4, scoped, tag = 'scoped memory for pointwise_feedforward.1']
    %10 = vsyncpa [#allocation3], 0
    %11 = vsyncpa [#allocation5], 0
    // Predicated region
    $region2: #{pointwise_feedforward.1} parent=1 // pred_check
      _
    $region3: #{pointwise_feedforward.1} parent=1 // pred_check_branch
      %13 = sbr.rel (0) target = $region5
    $region4: #{pointwise_feedforward.1} parent=1 // pred_region
      _
    $region5: #{pointwise_feedforward.1} parent=1 // pred_fallthru
      _
    // Predicated region
    $region6: #{pointwise_feedforward.1} parent=1 // pred_check
      _
    $region7: #{pointwise_feedforward.1} parent=1 // pred_check_branch
      %15 = sbr.rel (0) target = $region9
    $region8: #{pointwise_feedforward.1} parent=1 // pred_region
      %17 = vsyncadd [#allocation3], 0
      %s18 = sshll.u32 %s1, 4
      %s19 = int_to_ptr.hbm [resolvable:$true] %s18
      %s20 = sshll.u32 [#allocation2], 4
      %s21 = int_to_ptr.vmem [resolvable:$true] %s20
      %26 = dma.hbm_to_vmem [thread:$0]  %s19, 2048, %s21, [#allocation3], 128, 128, 8
    $region9: #{pointwise_feedforward.1} parent=1 // pred_fallthru
      _
    // Predicated region
    $region10: #{pointwise_feedforward.1} parent=1 // pred_check
      _
    $region11: #{pointwise_feedforward.1} parent=1 // pred_check_branch
      %28 = sbr.rel (0) target = $region13
    $region12: #{pointwise_feedforward.1} parent=1 // pred_region
      _
    $region13: #{pointwise_feedforward.1} parent=1 // pred_fallthru
      _
    // Predicated region
    $region14: #{pointwise_feedforward.1} parent=1 // pred_check
      _
    $region15: #{pointwise_feedforward.1} parent=1 // pred_check_branch
      %30 = sbr.rel (0) target = $region17
    $region16: #{pointwise_feedforward.1} parent=1 // pred_region
      %32 = vsyncadd [#allocation5], 0
      %s33 = sshll.u32 %s3, 4
      %s34 = int_to_ptr.hbm [resolvable:$true] %s33
      %s35 = sshll.u32 [#allocation4], 4
      %s36 = int_to_ptr.vmem [resolvable:$true] %s35
      %41 = dma.hbm_to_vmem [thread:$0]  %s34, 2048, %s36, [#allocation5], 128, 128, 8
    $region17: #{pointwise_feedforward.1} parent=1 // pred_fallthru
      _
    // Predicated region
    $region18: #{pointwise_feedforward.1} parent=1 // pred_check
      _
    $region19: #{pointwise_feedforward.1} parent=1 // pred_check_branch
      %43 = sbr.rel (0) target = $region21
    $region20: #{pointwise_feedforward.1} parent=1 // pred_region
      _
    $region21: #{pointwise_feedforward.1} parent=1 // pred_fallthru
      _
    // Predicated region
    $region22: #{pointwise_feedforward.1} parent=1 // pred_check
      _
    $region23: #{pointwise_feedforward.1} parent=1 // pred_check_branch
      %45 = sbr.rel (0) target = $region25
    $region24: #{pointwise_feedforward.1} parent=1 // pred_region
      %47 = dma.done [#allocation3], 2048
    $region25: #{pointwise_feedforward.1} parent=1 // pred_fallthru
      _
    // Predicated region
    $region26: #{pointwise_feedforward.1} parent=1 // pred_check
      _
    $region27: #{pointwise_feedforward.1} parent=1 // pred_check_branch
      %49 = sbr.rel (0) target = $region29
    $region28: #{pointwise_feedforward.1} parent=1 // pred_region
      %51 = dma.done [#allocation5], 2048
    $region29: #{pointwise_feedforward.1} parent=1 // pred_fallthru
      _
    %v52 = vld [vmem:[%s0] sm:$0xff]
    %v53 = vld [vmem:[%s0 + $0x8] sm:$0xff]
    %v54 = vld [vmem:[#allocation2] sm:$0xff]
    %v55 = vld [vmem:[#allocation2 + $0x8] sm:$0xff]
    %v56 = vld [vmem:[#allocation2 + $0x10] sm:$0xff]
    %v57 = vld [vmem:[#allocation2 + $0x18] sm:$0xff]
    %v58 = vld [vmem:[#allocation2 + $0x20] sm:$0xff]
    %v59 = vld [vmem:[#allocation2 + $0x28] sm:$0xff]
    %v60 = vld [vmem:[#allocation2 + $0x30] sm:$0xff]
    %v61 = vld [vmem:[#allocation2 + $0x38] sm:$0xff]
    %v62 = vld [vmem:[#allocation2 + $0x40] sm:$0xff]
    %v63 = vld [vmem:[#allocation2 + $0x48] sm:$0xff]
    %v64 = vld [vmem:[#allocation2 + $0x50] sm:$0xff]
    %v65 = vld [vmem:[#allocation2 + $0x58] sm:$0xff]
    %v66 = vld [vmem:[#allocation2 + $0x60] sm:$0xff]
    %v67 = vld [vmem:[#allocation2 + $0x68] sm:$0xff]
    %v68 = vld [vmem:[#allocation2 + $0x70] sm:$0xff]
    %v69 = vld [vmem:[#allocation2 + $0x78] sm:$0xff]
    %v70 = vld [vmem:[%s2] sm:$0x1]
    %v72 = vperm.slane %v70, 0
    %74 = vmatpush.msra.mxu0 %v69
    %75 = vmatpush.msra.mxu0 %v68
    %76 = vmatpush.msra.mxu0 %v67
    %77 = vmatpush.msra.mxu0 %v66
    %78 = vmatpush.msra.mxu0 %v65
    %79 = vmatpush.msra.mxu0 %v64
    %80 = vmatpush.msra.mxu0 %v63
    %81 = vmatpush.msra.mxu0 %v62
    %82 = vmatpush.msra.mxu0 %v61
    %83 = vmatpush.msra.mxu0 %v60
    %84 = vmatpush.msra.mxu0 %v59
    %85 = vmatpush.msra.mxu0 %v58
    %86 = vmatpush.msra.mxu0 %v57
    %87 = vmatpush.msra.mxu0 %v56
    %88 = vmatpush.msra.mxu0 %v55
    %89 = vmatpush.msra.mxu0 %v54
    %90 = vmatmul.f32.gmra.mxu0 %v52
    %v91 = vpop.f32.mrf.mxu0
    %v92 = vadd.f32 %v72, %v91
    %93 = vmatmul.f32.gmra.mxu0 %v53
    %v94 = vpop.f32.mrf.mxu0
    %v95 = vadd.f32 %v72, %v94
    %96 = vdwg.mxu0
    %v97 = vmax.f32 %v92, 0.0
    %v98 = vmax.f32 %v95, 0.0
    %v99 = vld [vmem:[#allocation4] sm:$0xff]
    %v100 = vld [vmem:[#allocation4 + $0x8] sm:$0xff]
    %v101 = vld [vmem:[#allocation4 + $0x10] sm:$0xff]
    %v102 = vld [vmem:[#allocation4 + $0x18] sm:$0xff]
    %v103 = vld [vmem:[#allocation4 + $0x20] sm:$0xff]
    %v104 = vld [vmem:[#allocation4 + $0x28] sm:$0xff]
    %v105 = vld [vmem:[#allocation4 + $0x30] sm:$0xff]
    %v106 = vld [vmem:[#allocation4 + $0x38] sm:$0xff]
    %v107 = vld [vmem:[#allocation4 + $0x40] sm:$0xff]
    %v108 = vld [vmem:[#allocation4 + $0x48] sm:$0xff]
    %v109 = vld [vmem:[#allocation4 + $0x50] sm:$0xff]
    %v110 = vld [vmem:[#allocation4 + $0x58] sm:$0xff]
    %v111 = vld [vmem:[#allocation4 + $0x60] sm:$0xff]
    %v112 = vld [vmem:[#allocation4 + $0x68] sm:$0xff]
    %v113 = vld [vmem:[#allocation4 + $0x70] sm:$0xff]
    %v114 = vld [vmem:[#allocation4 + $0x78] sm:$0xff]
    %v115 = vld [vmem:[%s4] sm:$0x1]
    %v117 = vperm.slane %v115, 0
    %119 = vmatpush.msra.mxu0 %v114
    %120 = vmatpush.msra.mxu0 %v113
    %121 = vmatpush.msra.mxu0 %v112
    %122 = vmatpush.msra.mxu0 %v111
    %123 = vmatpush.msra.mxu0 %v110
    %124 = vmatpush.msra.mxu0 %v109
    %125 = vmatpush.msra.mxu0 %v108
    %126 = vmatpush.msra.mxu0 %v107
    %127 = vmatpush.msra.mxu0 %v106
    %128 = vmatpush.msra.mxu0 %v105
    %129 = vmatpush.msra.mxu0 %v104
    %130 = vmatpush.msra.mxu0 %v103
    %131 = vmatpush.msra.mxu0 %v102
    %132 = vmatpush.msra.mxu0 %v101
    %133 = vmatpush.msra.mxu0 %v100
    %134 = vmatpush.msra.mxu0 %v99
    %135 = vmatmul.f32.gmra.mxu0 %v97
    %v136 = vpop.f32.mrf.mxu0
    %v137 = vadd.f32 %v117, %v136
    %138 = vmatmul.f32.gmra.mxu0 %v98
    %v139 = vpop.f32.mrf.mxu0
    %v140 = vadd.f32 %v117, %v139
    %141 = vdwg.mxu0
    %v142 = vadd.f32 %v137, %v52
    %v143 = vadd.f32 %v140, %v53
    %144 = vst [vmem:[%s5] sm:$0xff] %v142
    %145 = vst [vmem:[%s5 + $0x8] sm:$0xff] %v143
    // Predicated region
    $region30: #{pointwise_feedforward.1} parent=1 // pred_check
      _
    $region31: #{pointwise_feedforward.1} parent=1 // pred_check_branch
      %147 = sbr.rel (0) target = $region33
    $region32: #{pointwise_feedforward.1} parent=1 // pred_region
      _
    $region33: #{pointwise_feedforward.1} parent=1 // pred_fallthru
      _
    // Predicated region
    $region34: #{pointwise_feedforward.1} parent=1 // pred_check
      _
    $region35: #{pointwise_feedforward.1} parent=1 // pred_check_branch
      %149 = sbr.rel (0) target = $region37
    $region36: #{pointwise_feedforward.1} parent=1 // pred_region
      _
    $region37: #{pointwise_feedforward.1} parent=1 // pred_fallthru
      _
    %150 = vsyncpa [#allocation3], 1
    %151 = vsyncpa [#allocation5], 1

</llo_original>
